<compile_context>
chip_gen: v5e
topology: v5e:2x2
jax: 0.10.0
libtpu: 0.0.40
codegen_flags: <defaults>
</compile_context>

<pallas_src>
import jax
import jax.numpy as jnp
from jax import lax
from jax.experimental import pallas as pl
from jax.experimental.pallas import tpu as pltpu


def linear_kernel(x_ref, w_ref, b_ref, o_ref):
    # Single-tile kernel: all operands fit trivially in VMEM (<1 KiB total).
    x = x_ref[...]     # (B, in)    f32
    w = w_ref[...]     # (out, in)  f32 — PyTorch nn.Linear layout, untransposed
    b = b_ref[...]     # (1, out)   f32
    # Contract on in_features of both operands (== x @ w.T) so the transpose is
    # taken "for free" by the matmul unit instead of a separate host-side op.
    acc = lax.dot_general(
        x, w,
        dimension_numbers=(((1,), (1,)), ((), ())),
        preferred_element_type=jnp.float32,
    )
    o_ref[...] = (acc + b).astype(o_ref.dtype)


def linear_pallas(x, weight, bias):
    """y = x @ weight.T + bias (torch.nn.Linear semantics).

    `weight` is kept in PyTorch (out_features, in_features) layout — no
    host-side transpose.
    """
    B, in_f = x.shape
    out_f = weight.shape[0]
    b2 = bias.reshape(1, out_f)  # keep refs 2-D for TPU (sublane, lane) layout

    itemsize = jnp.dtype(x.dtype).itemsize
    bytes_accessed = itemsize * (B * in_f + out_f * in_f + out_f + B * out_f)

    return pl.pallas_call(
        linear_kernel,
        out_shape=jax.ShapeDtypeStruct((B, out_f), x.dtype),
        in_specs=[
            pl.BlockSpec(memory_space=pltpu.VMEM),   # x       (B, in)
            pl.BlockSpec(memory_space=pltpu.VMEM),   # weight  (out, in)
            pl.BlockSpec(memory_space=pltpu.VMEM),   # bias    (1, out)
        ],
        out_specs=pl.BlockSpec(memory_space=pltpu.VMEM),
        cost_estimate=pl.CostEstimate(
            flops=2 * B * in_f * out_f,
            bytes_accessed=bytes_accessed,
            transcendentals=0,
        ),
    )(x, weight, b2)


if __name__ == "__main__":
    key = jax.random.PRNGKey(0)
    kx, kw, kb = jax.random.split(key, 3)

    # Net: fc1 = nn.Linear(3, 3)  -> weight (3, 3), bias (3,)
    in_features, out_features = 3, 3
    batch = 2

    x = jax.random.normal(kx, (batch, in_features), dtype=jnp.float32)
    # Deterministic, PyTorch-like uniform init in [-1/sqrt(in), 1/sqrt(in)]
    bound = 1.0 / jnp.sqrt(jnp.float32(in_features))
    weight = jax.random.uniform(
        kw, (out_features, in_features), minval=-bound, maxval=bound,
        dtype=jnp.float32)
    bias = jax.random.uniform(
        kb, (out_features,), minval=-bound, maxval=bound, dtype=jnp.float32)

    y = linear_pallas(x, weight, bias)
    jax.block_until_ready(y)

    # Sanity check against plain-JAX reference (nn.Linear semantics).
    y_ref = x @ weight.T + bias
    assert y.shape == (batch, out_features)
    assert jnp.allclose(y, y_ref, atol=1e-5, rtol=1e-5)

    print("KERNEL_OK")
</pallas_src>

<mosaic_0001>
module attributes {stable_mosaic.version = 11 : i64} {
  func.func @linear_kernel(%arg0: memref<2x3xf32, #tpu.memory_space<vmem>>, %arg1: memref<3x3xf32, #tpu.memory_space<vmem>>, %arg2: memref<1x3xf32, #tpu.memory_space<vmem>>, %arg3: memref<2x3xf32, #tpu.memory_space<vmem>>) attributes {dimension_semantics = [], scalar_prefetch = 0 : i64, scratch_operands = 0 : i64, tpu.core_type = #tpu.core_type<tc>} {
    %c0 = arith.constant 0 : index
    %c0_0 = arith.constant 0 : index
    %0 = vector.load %arg0[%c0, %c0_0] : memref<2x3xf32, #tpu.memory_space<vmem>>, vector<2x3xf32>
    %c0_1 = arith.constant 0 : index
    %c0_2 = arith.constant 0 : index
    %1 = vector.load %arg1[%c0_1, %c0_2] : memref<3x3xf32, #tpu.memory_space<vmem>>, vector<3x3xf32>
    %c0_3 = arith.constant 0 : index
    %c0_4 = arith.constant 0 : index
    %2 = vector.load %arg2[%c0_3, %c0_4] : memref<1x3xf32, #tpu.memory_space<vmem>>, vector<1x3xf32>
    %cst = arith.constant dense<0.000000e+00> : vector<2x3xf32>
    %3 = tpu.matmul %0, %1, %cst {dimension_numbers = #tpu.dot_dimension_numbers<[1], [1], [0], [0], [0, 0, 1, 0], [], []>} : vector<2x3xf32>, vector<3x3xf32>, vector<2x3xf32> -> vector<2x3xf32>
    %4 = vector.broadcast %2 : vector<1x3xf32> to vector<2x3xf32>
    %5 = arith.addf %3, %4 : vector<2x3xf32>
    %c0_5 = arith.constant 0 : index
    %c0_6 = arith.constant 0 : index
    %6 = vector.load %arg3[%c0_5, %c0_6] : memref<2x3xf32, #tpu.memory_space<vmem>>, vector<2x3xf32>
    tpu.vector_store %arg3[%c0_5, %c0_6], %5 {strides = array<i32>} : memref<2x3xf32, #tpu.memory_space<vmem>>, vector<2x3xf32>,
    return
  }
}

</mosaic_0001>

<llo_original>
// kernel: tpu_custom_call.1
$region0: #{tpu_custom_call.1}
  #allocation0 [shape = 'u32[]', space=smem, size = 0x4, offset = 0x4, fixed_abs, tag = 'smem constant byte address 0x4 - core index']
  #allocation1 [shape = 'u32[72,128]{1,0:T(1,128)}', space=vmem, size = 0x9000, scoped, tag = 'internal scratch']
  %s0 = inlined_call_operand.hbm [shape: f32[2,3], index: 0, kind: input, shape index: {}]
  %s1 = inlined_call_operand.hbm [shape: f32[3,3], index: 1, kind: input, shape index: {}]
  %s2 = inlined_call_operand.vmem [shape: f32[1,3], index: 2, kind: input, shape index: {}]
  %s3 = inlined_call_operand.hbm [shape: f32[2,3], index: 3, kind: output, shape index: {}]
  %s4 = sld [smem:[#allocation0]]
  $region30: #{tpu_custom_call.1} parent=0
    _
  %s6 = ssub.s32 1, %s4
  %s7 = scalar_select 0, %s6, %s4
  $region1: #{tpu_custom_call.1} parent=0
    #allocation2 [shape = 'u8[1024]{0}', space=vmem, size = 0x400, scoped, tag = 'input window, operand 0, single buffered']
    #allocation3 [shape = 's32[1]{0}', space=sflag, size = 0x4, scoped, tag = 'scoped memory for tpu_custom_call.1']
    #allocation4 [shape = 's32[1]{0}', space=sflag, size = 0x4, scoped, tag = 'scoped memory for tpu_custom_call.1']
    #allocation5 [shape = 'u8[2048]{0}', space=vmem, size = 0x800, scoped, tag = 'input window, operand 1, single buffered']
    #allocation6 [shape = 's32[1]{0}', space=sflag, size = 0x4, scoped, tag = 'scoped memory for tpu_custom_call.1']
    #allocation7 [shape = 'u8[1024]{0}', space=vmem, size = 0x400, scoped, tag = 'output window, operand 0, single buffered']
    %8 = vsyncpa [#allocation3], 0
    %9 = vsyncpa [#allocation6], 0
    %10 = vsyncpa [#allocation4], 0
    // Predicated region
    $region2: #{tpu_custom_call.1} parent=1 // pred_check
      _
    $region3: #{tpu_custom_call.1} parent=1 // pred_check_branch
      %12 = sbr.rel (0) target = $region5
    $region4: #{tpu_custom_call.1} parent=1 // pred_region
      %14 = vsyncadd [#allocation3], 0
      %s16 = sshll.u32 %s0, 4
      %s17 = int_to_ptr.hbm [resolvable:$true] %s16
      %s18 = sshll.u32 [#allocation2], 4
      %s19 = int_to_ptr.vmem [resolvable:$true] %s18
      %21 = dma.hbm_to_vmem [thread:$0]  %s17, 32, %s19, [#allocation3]
    $region5: #{tpu_custom_call.1} parent=1 // pred_fallthru
      _
    // Predicated region
    $region6: #{tpu_custom_call.1} parent=1 // pred_check
      _
    $region7: #{tpu_custom_call.1} parent=1 // pred_check_branch
      %23 = sbr.rel (0) target = $region9
    $region8: #{tpu_custom_call.1} parent=1 // pred_region
      %25 = vsyncadd [#allocation6], 0
      %s27 = sshll.u32 %s1, 4
      %s28 = int_to_ptr.hbm [resolvable:$true] %s27
      %s29 = sshll.u32 [#allocation5], 4
      %s30 = int_to_ptr.vmem [resolvable:$true] %s29
      %32 = dma.hbm_to_vmem [thread:$0]  %s28, 64, %s30, [#allocation6]
    $region9: #{tpu_custom_call.1} parent=1 // pred_fallthru
      _
    // Predicated region
    $region10: #{tpu_custom_call.1} parent=1 // pred_check
      _
    $region11: #{tpu_custom_call.1} parent=1 // pred_check_branch
      %34 = sbr.rel (0) target = $region13
    $region12: #{tpu_custom_call.1} parent=1 // pred_region
      _
    $region13: #{tpu_custom_call.1} parent=1 // pred_fallthru
      _
    // Predicated region
    $region14: #{tpu_custom_call.1} parent=1 // pred_check
      _
    $region15: #{tpu_custom_call.1} parent=1 // pred_check_branch
      %36 = sbr.rel (0) target = $region17
    $region16: #{tpu_custom_call.1} parent=1 // pred_region
      %38 = dma.done [#allocation3], 32
    $region17: #{tpu_custom_call.1} parent=1 // pred_fallthru
      _
    // Predicated region
    $region18: #{tpu_custom_call.1} parent=1 // pred_check
      _
    $region19: #{tpu_custom_call.1} parent=1 // pred_check_branch
      %40 = sbr.rel (0) target = $region21
    $region20: #{tpu_custom_call.1} parent=1 // pred_region
      %42 = dma.done [#allocation6], 64
    $region21: #{tpu_custom_call.1} parent=1 // pred_fallthru
      _
    %v43 = vld [vmem:[#allocation2] sm:$0x3]
    %v44 = vld [vmem:[#allocation5] sm:$0x7]
    %v45 = vld [vmem:[%s2] sm:$0x1]
    %v47 = vperm.slane %v45, 0
    %vm49 = vcmask 23552
    %v51 = vsel %vm49, %v43, 0
    %v54 = vsel %vm49, %v44, 0
    %56 = vmatpush.xpose.msra.mxu0 0.0
    %57 = vmatpush.xpose.msra.mxu0 0.0
    %58 = vmatpush.xpose.msra.mxu0 0.0
    %59 = vmatpush.xpose.msra.mxu0 0.0
    %60 = vmatpush.xpose.msra.mxu0 0.0
    %61 = vmatpush.xpose.msra.mxu0 0.0
    %62 = vmatpush.xpose.msra.mxu0 0.0
    %63 = vmatpush.xpose.msra.mxu0 0.0
    %64 = vmatpush.xpose.msra.mxu0 0.0
    %65 = vmatpush.xpose.msra.mxu0 0.0
    %66 = vmatpush.xpose.msra.mxu0 0.0
    %67 = vmatpush.xpose.msra.mxu0 0.0
    %68 = vmatpush.xpose.msra.mxu0 0.0
    %69 = vmatpush.xpose.msra.mxu0 0.0
    %70 = vmatpush.xpose.msra.mxu0 0.0
    %71 = vmatpush.xpose.msra.mxu0 %v54
    %72 = vmatmul.f32.gmra.mxu0 %v51
    %v73 = vpop.f32.mrf.mxu0
    %v74 = vadd.f32 %v47, %v73
    %75 = vdwg.mxu0
    %vm76 = vcmask 17408
    %77 = vst.msk [vmem:[#allocation7] sm:$0x3] %vm76, %v74
    // Predicated region
    $region22: #{tpu_custom_call.1} parent=1 // pred_check
      _
    $region23: #{tpu_custom_call.1} parent=1 // pred_check_branch
      %79 = sbr.rel (0) target = $region25
    $region24: #{tpu_custom_call.1} parent=1 // pred_region
      %81 = vsyncadd [#allocation4], 0
      %s83 = sshll.u32 [#allocation7], 4
      %s84 = int_to_ptr.vmem [resolvable:$true] %s83
      %s85 = sshll.u32 %s3, 4
      %s86 = int_to_ptr.hbm [resolvable:$true] %s85
      %88 = dma.vmem_to_hbm [thread:$0]  %s84, 32, %s86, [#allocation4]
    $region25: #{tpu_custom_call.1} parent=1 // pred_fallthru
      _
    // Predicated region
    $region26: #{tpu_custom_call.1} parent=1 // pred_check
      _
    $region27: #{tpu_custom_call.1} parent=1 // pred_check_branch
      %90 = sbr.rel (0) target = $region29
    $region28: #{tpu_custom_call.1} parent=1 // pred_region
      %92 = dma.done [#allocation4], 32
    $region29: #{tpu_custom_call.1} parent=1 // pred_fallthru
      _
    %93 = vsyncpa [#allocation3], 1
    %94 = vsyncpa [#allocation6], 1
    %95 = vsyncpa [#allocation4], 1

</llo_original>
